<compile_context>
chip_gen: v5e
topology: v5e:2x2
jax: 0.10.0
libtpu: 0.0.40
codegen_flags: <defaults>
</compile_context>

<pallas_src>
import jax
import jax.numpy as jnp
from jax.experimental import pallas as pl
from jax.experimental.pallas import tpu as pltpu

_TARGET_BLOCK_BYTES = 2 * 1024 * 1024   # per x/out block; x4 (in+out, double-buffered) ~ 8 MiB
_LANE_TILE_CAP = 8192                   # max lanes per block (multiple of 128)


def _affine_kernel(x_ref, w_ref, o_ref):
    # x: (TR, TL), w: (TR, 1) -> broadcast over the lane axis.
    o_ref[...] = x_ref[...] * w_ref[...]


def _affine_bias_kernel(x_ref, w_ref, b_ref, o_ref):
    o_ref[...] = x_ref[...] * w_ref[...] + b_ref[...]


def _pick_tile(extent, unit, cap):
    """Largest multiple of `unit` that divides `extent`, at most `cap`.

    Falls back to the full extent if `extent` is not a multiple of `unit`
    (legal for BlockSpec: a block dim equal to the full array dim).
    """
    if extent % unit != 0:
        return extent
    t = max(unit, min(extent, (cap // unit) * unit))
    while extent % t != 0:
        t -= unit
    return t


def affine_layer(x, weight, bias=None):
    """Pallas implementation of AffineLayer.forward.

    Args:
      x:      (N, C, H, W) array (NCHW, like PyTorch).
      weight: (1, C, 1, 1) per-channel scale.
      bias:   optional (1, C, 1, 1) per-channel shift.
    Returns:
      (N, C, H, W) array in the PyTorch-promoted dtype of (x, weight[, bias]).
    """
    N, C, H, W = x.shape
    R, L = N * C, H * W

    # Match PyTorch broadcasting dtype promotion (e.g. bf16 x * f32 w -> f32).
    dtypes = [x.dtype, weight.dtype] + ([bias.dtype] if bias is not None else [])
    out_dtype = jnp.result_type(*dtypes)

    # Free row-major view: one channel plane per row (row r -> channel r % C).
    x2 = x.reshape(R, L)
    w_rows = jnp.tile(weight.reshape(C, 1).astype(out_dtype), (N, 1))
    b_rows = None
    if bias is not None:
        b_rows = jnp.tile(bias.reshape(C, 1).astype(out_dtype), (N, 1))

    # Tile selection: lane tile a multiple of 128 when possible, row tile a
    # multiple of 8, block size capped at ~_TARGET_BLOCK_BYTES.
    itemsize = max(jnp.dtype(x.dtype).itemsize, jnp.dtype(out_dtype).itemsize)
    TL = _pick_tile(L, 128, _LANE_TILE_CAP)
    row_cap = max(8, (_TARGET_BLOCK_BYTES // (TL * itemsize)) // 8 * 8)
    TR = _pick_tile(R, 8, row_cap)
    grid = (R // TR, L // TL)

    x_spec = pl.BlockSpec((TR, TL), lambda i, j: (i, j))
    p_spec = pl.BlockSpec((TR, 1), lambda i, j: (i, 0))
    out_spec = pl.BlockSpec((TR, TL), lambda i, j: (i, j))
    out_shape = jax.ShapeDtypeStruct((R, L), out_dtype)

    n_params = 1 if bias is None else 2
    cost = pl.CostEstimate(
        flops=R * L * n_params,
        transcendentals=0,
        bytes_accessed=(x2.size * jnp.dtype(x.dtype).itemsize
                        + R * L * jnp.dtype(out_dtype).itemsize
                        + n_params * R * jnp.dtype(out_dtype).itemsize),
    )
    cparams = pltpu.CompilerParams(
        dimension_semantics=("parallel", "parallel"))

    if bias is not None:
        kernel, in_specs, args = (
            _affine_bias_kernel, [x_spec, p_spec, p_spec], (x2, w_rows, b_rows))
    else:
        kernel, in_specs, args = (
            _affine_kernel, [x_spec, p_spec], (x2, w_rows))

    out2 = pl.pallas_call(
        kernel,
        out_shape=out_shape,
        grid_spec=pltpu.PrefetchScalarGridSpec(
            num_scalar_prefetch=0,
            grid=grid,
            in_specs=in_specs,
            out_specs=out_spec,
        ),
        compiler_params=cparams,
        cost_estimate=cost,
    )(*args)

    # Free view back to NCHW.
    return out2.reshape(N, C, H, W)


if __name__ == "__main__":
    key = jax.random.PRNGKey(0)
    kx, kw, kb, kx2 = jax.random.split(key, 4)

    N, C, H, W = 2, 4, 16, 16
    x = jax.random.normal(kx, (N, C, H, W), dtype=jnp.float32)

    # AffineLayer.__init__ fills weight=1, bias=0 (identity); add a small
    # deterministic perturbation so the kernel is actually exercised.
    weight = jnp.ones((1, C, 1, 1), jnp.float32) + 0.1 * jax.random.normal(
        kw, (1, C, 1, 1), dtype=jnp.float32)
    bias = jnp.zeros((1, C, 1, 1), jnp.float32) + 0.1 * jax.random.normal(
        kb, (1, C, 1, 1), dtype=jnp.float32)

    # bias=True path
    out_b = jax.block_until_ready(affine_layer(x, weight, bias))
    ref_b = x * weight + bias
    assert out_b.shape == x.shape and out_b.dtype == ref_b.dtype
    assert jnp.allclose(out_b, ref_b, atol=1e-6, rtol=1e-6)

    # default bias=False path
    out_nb = jax.block_until_ready(affine_layer(x, weight, None))
    assert jnp.allclose(out_nb, x * weight, atol=1e-6, rtol=1e-6)

    # Ragged spatial size (H*W not a multiple of 128): exercises the
    # full-extent lane fallback (masked stores, no extra HBM padding passes).
    xr = jax.random.normal(kx2, (N, C, 10, 10), dtype=jnp.float32)
    out_r = jax.block_until_ready(affine_layer(xr, weight, bias))
    assert jnp.allclose(out_r, xr * weight + bias, atol=1e-6, rtol=1e-6)

    print("KERNEL_OK")
</pallas_src>

<mosaic_0001>
module attributes {stable_mosaic.version = 11 : i64} {
  func.func @_affine_bias_kernel(%arg0: i32, %arg1: i32, %arg2: memref<8x256xf32, #tpu.memory_space<vmem>>, %arg3: memref<8x1xf32, #tpu.memory_space<vmem>>, %arg4: memref<8x1xf32, #tpu.memory_space<vmem>>, %arg5: memref<8x256xf32, #tpu.memory_space<vmem>>) attributes {dimension_semantics = [#tpu.dimension_semantics<parallel>, #tpu.dimension_semantics<parallel>], iteration_bounds = array<i64: 1, 1>, scalar_prefetch = 0 : i64, scratch_operands = 0 : i64, tpu.core_type = #tpu.core_type<tc>, window_params = [{transform_indices = @transform_0, window_bounds = array<i64: 8, 256>}, {transform_indices = @transform_1, window_bounds = array<i64: 8, 1>}, {transform_indices = @transform_2, window_bounds = array<i64: 8, 1>}, {transform_indices = @transform_3, window_bounds = array<i64: 8, 256>}]} {
    %c0 = arith.constant 0 : index
    %c0_0 = arith.constant 0 : index
    %0 = vector.load %arg2[%c0, %c0_0] : memref<8x256xf32, #tpu.memory_space<vmem>>, vector<8x256xf32>
    %c0_1 = arith.constant 0 : index
    %c0_2 = arith.constant 0 : index
    %1 = vector.load %arg3[%c0_1, %c0_2] : memref<8x1xf32, #tpu.memory_space<vmem>>, vector<8x1xf32>
    %2 = vector.broadcast %1 : vector<8x1xf32> to vector<8x256xf32>
    %3 = arith.mulf %0, %2 : vector<8x256xf32>
    %c0_3 = arith.constant 0 : index
    %c0_4 = arith.constant 0 : index
    %4 = vector.load %arg4[%c0_3, %c0_4] : memref<8x1xf32, #tpu.memory_space<vmem>>, vector<8x1xf32>
    %5 = vector.broadcast %4 : vector<8x1xf32> to vector<8x256xf32>
    %6 = arith.addf %3, %5 : vector<8x256xf32>
    %c0_5 = arith.constant 0 : index
    %c0_6 = arith.constant 0 : index
    %7 = vector.load %arg5[%c0_5, %c0_6] : memref<8x256xf32, #tpu.memory_space<vmem>>, vector<8x256xf32>
    tpu.vector_store %arg5[%c0_5, %c0_6], %6 {strides = array<i32>} : memref<8x256xf32, #tpu.memory_space<vmem>>, vector<8x256xf32>,
    return
  }
  func.func @transform_0(%arg0: i32, %arg1: i32) -> (i32, i32) {
    %c0_i32 = arith.constant 0 : i32
    return %arg0, %arg1 : i32, i32
  }
  func.func @transform_1(%arg0: i32, %arg1: i32) -> (i32, i32) {
    %c0_i32 = arith.constant 0 : i32
    %c0_i32_0 = arith.constant 0 : i32
    return %arg0, %c0_i32 : i32, i32
  }
  func.func @transform_2(%arg0: i32, %arg1: i32) -> (i32, i32) {
    %c0_i32 = arith.constant 0 : i32
    %c0_i32_0 = arith.constant 0 : i32
    return %arg0, %c0_i32 : i32, i32
  }
  func.func @transform_3(%arg0: i32, %arg1: i32) -> (i32, i32) {
    %c0_i32 = arith.constant 0 : i32
    return %arg0, %arg1 : i32, i32
  }
}

</mosaic_0001>

<llo_original>
// kernel: tpu_custom_call.1
$region0: #{tpu_custom_call.1}
  #allocation0 [shape = 'u32[]', space=smem, size = 0x4, offset = 0x4, fixed_abs, tag = 'smem constant byte address 0x4 - core index']
  #allocation1 [shape = 'u32[72,128]{1,0:T(1,128)}', space=vmem, size = 0x9000, scoped, tag = 'internal scratch']
  %s0 = inlined_call_operand.vmem [shape: f32[8,256], index: 0, kind: input, shape index: {}]
  %s1 = inlined_call_operand.vmem [shape: f32[8,1], index: 1, kind: input, shape index: {}]
  %s2 = inlined_call_operand.vmem [shape: f32[8,1], index: 2, kind: input, shape index: {}]
  %s3 = inlined_call_operand.hbm [shape: f32[8,256], index: 3, kind: output, shape index: {}]
  %s4 = sld [smem:[#allocation0]]
  $region22: #{tpu_custom_call.1} parent=0
    _
  %s6 = ssub.s32 1, %s4
  %s7 = scalar_select 0, %s6, %s4
  $region1: #{tpu_custom_call.1} parent=0
    #allocation2 [shape = 'u8[8192]{0}', space=vmem, size = 0x2000, scoped, tag = 'output window, operand 0, single buffered']
    #allocation3 [shape = 's32[1]{0}', space=sflag, size = 0x4, scoped, tag = 'scoped memory for tpu_custom_call.1']
    %8 = vsyncpa [#allocation3], 0
    // Predicated region
    $region2: #{tpu_custom_call.1} parent=1 // pred_check
      _
    $region3: #{tpu_custom_call.1} parent=1 // pred_check_branch
      %10 = sbr.rel (0) target = $region5
    $region4: #{tpu_custom_call.1} parent=1 // pred_region
      _
    $region5: #{tpu_custom_call.1} parent=1 // pred_fallthru
      _
    // Predicated region
    $region6: #{tpu_custom_call.1} parent=1 // pred_check
      _
    $region7: #{tpu_custom_call.1} parent=1 // pred_check_branch
      %12 = sbr.rel (0) target = $region9
    $region8: #{tpu_custom_call.1} parent=1 // pred_region
      _
    $region9: #{tpu_custom_call.1} parent=1 // pred_fallthru
      _
    // Predicated region
    $region10: #{tpu_custom_call.1} parent=1 // pred_check
      _
    $region11: #{tpu_custom_call.1} parent=1 // pred_check_branch
      %14 = sbr.rel (0) target = $region13
    $region12: #{tpu_custom_call.1} parent=1 // pred_region
      _
    $region13: #{tpu_custom_call.1} parent=1 // pred_fallthru
      _
    %v15 = vld [vmem:[%s0] sm:$0xff]
    %v16 = vld [vmem:[%s0 + $0x8] sm:$0xff]
    %v17 = vld [vmem:[%s1] sm:$0xff]
    %19 = vset.pattern.permute.xlu0 0
    %20 = vperm.xlu0 %19, %v17
    %v21 = vpop.permute.xlu0 %20
    %v23 = vmul.f32 %v15, %v21
    %v24 = vmul.f32 %v16, %v21
    %v25 = vld [vmem:[%s2] sm:$0xff]
    %27 = vset.pattern.permute.xlu0 0
    %28 = vperm.xlu0 %27, %v25
    %v29 = vpop.permute.xlu0 %28
    %v31 = vadd.f32 %v23, %v29
    %v32 = vadd.f32 %v24, %v29
    %33 = vst [vmem:[#allocation2] sm:$0xff] %v31
    %34 = vst [vmem:[#allocation2 + $0x8] sm:$0xff] %v32
    // Predicated region
    $region14: #{tpu_custom_call.1} parent=1 // pred_check
      _
    $region15: #{tpu_custom_call.1} parent=1 // pred_check_branch
      %36 = sbr.rel (0) target = $region17
    $region16: #{tpu_custom_call.1} parent=1 // pred_region
      %38 = vsyncadd [#allocation3], 0
      %s40 = sshll.u32 [#allocation2], 4
      %s41 = int_to_ptr.vmem [resolvable:$true] %s40
      %s42 = sshll.u32 %s3, 4
      %s43 = int_to_ptr.hbm [resolvable:$true] %s42
      %45 = dma.vmem_to_hbm [thread:$0]  %s41, 256, %s43, [#allocation3]
    $region17: #{tpu_custom_call.1} parent=1 // pred_fallthru
      _
    // Predicated region
    $region18: #{tpu_custom_call.1} parent=1 // pred_check
      _
    $region19: #{tpu_custom_call.1} parent=1 // pred_check_branch
      %47 = sbr.rel (0) target = $region21
    $region20: #{tpu_custom_call.1} parent=1 // pred_region
      %49 = dma.done [#allocation3], 256
    $region21: #{tpu_custom_call.1} parent=1 // pred_fallthru
      _
    %50 = vsyncpa [#allocation3], 1

</llo_original>
